<compile_context>
chip_gen: v5e
topology: v5e:2x2
jax: 0.10.0
libtpu: 0.0.40
codegen_flags: <defaults>
</compile_context>

<pallas_src>
import jax
import jax.numpy as jnp
from jax.experimental import pallas as pl
from jax.experimental.pallas import tpu as pltpu


# --------------------------------------------------------------------------
# Pallas kernel: model forward (Bt samples / step) + LanguageModelCriterion
# --------------------------------------------------------------------------
def _lm_loss_kernel(ids_ref, fc_ref, att_ref, attm_ref, tgt_ref, mask_ref,
                    emb_ref, w_fc_ref, w_att_ref, w_out_ref,
                    loss_ref, msum_ref):
    Bt, T, _ = ids_ref.shape
    V, H = emb_ref.shape
    Dfc = fc_ref.shape[-1]
    BtT = Bt * T

    # ---- token embedding lookup in-kernel: one-hot @ E on the MXU --------
    # (exact row-pick; avoids materializing emb (B,T,H) in HBM in the wrapper)
    ids = ids_ref[...].reshape(BtT, 1)                         # (BtT, 1) int32
    vocab_iota = jax.lax.broadcasted_iota(jnp.int32, (BtT, V), 1)
    emb = jnp.dot((vocab_iota == ids).astype(jnp.float32), emb_ref[...],
                  preferred_element_type=jnp.float32)          # (BtT, H)

    # ---- masked mean-pool of attention features ---------------------------
    att = att_ref[...]                                         # (Bt, Natt, Datt)
    am = attm_ref[...]                                         # (Bt, Natt, 1)
    pool = jnp.sum(att * am, axis=1) / (jnp.sum(am, axis=1) + 1e-8)  # (Bt, Datt)

    # ---- context from fc feats + pooled att feats -> (Bt, H) --------------
    # (could be a single fused [fc|pool] @ [W_fc;W_att] matmul; kept as two
    #  dots — the fusion is a minor-latency win only)
    fc = fc_ref[...].reshape(Bt, Dfc)                          # (Bt, Dfc)
    ctx = jnp.dot(fc, w_fc_ref[...], preferred_element_type=jnp.float32)
    ctx = ctx + jnp.dot(pool, w_att_ref[...],
                        preferred_element_type=jnp.float32)    # (Bt, H)

    # ---- decoder hidden states + vocab projection (one big MXU matmul) ----
    ctx_rep = jnp.broadcast_to(ctx[:, None, :], (Bt, T, H)).reshape(BtT, H)
    h = jnp.tanh(emb + ctx_rep)                                # (BtT, H)
    # NOTE: for production V/H, cast h and w_out to bf16 here (keep
    # preferred_element_type=f32) and tile V with an online softmax on v7x.
    logits = jnp.dot(h, w_out_ref[...],
                     preferred_element_type=jnp.float32)       # (BtT, V)

    # ---- fused log-softmax + target gather (no (BtT,V) logp materialized) -
    m = jnp.max(logits, axis=-1, keepdims=True)
    lse = m + jnp.log(jnp.sum(jnp.exp(logits - m), axis=-1, keepdims=True))
    tgt = tgt_ref[...].reshape(BtT, 1)                         # (BtT, 1) int32
    tgt_logit = jnp.sum(jnp.where(vocab_iota == tgt, logits, 0.0),
                        axis=-1, keepdims=True)                # (BtT, 1)
    tgt_logp = tgt_logit - lse                                 # (BtT, 1)

    # ---- per-block partial masked-NLL numerator / denominator -------------
    mask = mask_ref[...].reshape(BtT, 1)                       # (BtT, 1)
    loss_ref[...] = -jnp.sum(tgt_logp * mask, keepdims=True)   # (1, 1)
    msum_ref[...] = jnp.sum(mask, keepdims=True)               # (1, 1)


def _pick_block_batch(B, T, max_rows=512):
    """Largest divisor of B whose Bt*T row count stays within max_rows
    (fills MXU rows while keeping the (Bt*T, V) logits tile bounded)."""
    best = 1
    for bt in range(1, B + 1):
        if B % bt == 0 and bt * T <= max_rows:
            best = bt
    return best


def _lm_loss_pallas(ids3, fc3, att_feats, attm3, tgt3, mask3,
                    emb_tab, w_fc, w_att, w_out):
    B, T, _ = ids3.shape
    _, Natt, Datt = att_feats.shape
    Dfc = fc3.shape[-1]
    V, H = emb_tab.shape

    Bt = _pick_block_batch(B, T)
    NB = B // Bt

    loss_p, msum_p = pl.pallas_call(
        _lm_loss_kernel,
        out_shape=(jax.ShapeDtypeStruct((NB, 1), jnp.float32),
                   jax.ShapeDtypeStruct((NB, 1), jnp.float32)),
        grid_spec=pltpu.PrefetchScalarGridSpec(
            num_scalar_prefetch=0,
            grid=(NB,),
            in_specs=[
                pl.BlockSpec((Bt, T, 1), lambda b: (b, 0, 0)),        # input ids
                pl.BlockSpec((Bt, 1, Dfc), lambda b: (b, 0, 0)),      # fc feats
                pl.BlockSpec((Bt, Natt, Datt), lambda b: (b, 0, 0)),  # att feats
                pl.BlockSpec((Bt, Natt, 1), lambda b: (b, 0, 0)),     # att masks
                pl.BlockSpec((Bt, T, 1), lambda b: (b, 0, 0)),        # targets
                pl.BlockSpec((Bt, T, 1), lambda b: (b, 0, 0)),        # out mask
                # Constant-index weight blocks (resident across the grid).
                # Production: pipeline_mode=pl.Buffered(1) to single-buffer.
                pl.BlockSpec((V, H), lambda b: (0, 0)),               # E
                pl.BlockSpec((Dfc, H), lambda b: (0, 0)),             # W_fc
                pl.BlockSpec((Datt, H), lambda b: (0, 0)),            # W_att
                pl.BlockSpec((H, V), lambda b: (0, 0)),               # W_out
            ],
            out_specs=[pl.BlockSpec((1, 1), lambda b: (b, 0)),
                       pl.BlockSpec((1, 1), lambda b: (b, 0))],
        ),
        compiler_params=pltpu.CompilerParams(
            dimension_semantics=("parallel",)),   # per-block partials => safe
    )(ids3, fc3, att_feats, attm3, tgt3, mask3, emb_tab, w_fc, w_att, w_out)

    # LanguageModelCriterion normalization: sum(-logp * mask) / sum(mask)
    # (same NaN-on-empty-mask behavior as the torch reference, by design)
    return jnp.sum(loss_p) / jnp.sum(msum_p)


# --------------------------------------------------------------------------
# LossWrapper.forward (lm-loss path): glue + kernel call
# --------------------------------------------------------------------------
def loss_wrapper_forward(params, opt, fc_feats, att_feats, labels, masks,
                         att_masks, gts=None, gt_indices=None,
                         sc_flag=False, struc_flag=False,
                         counterfactual_weight=0.0):
    assert not sc_flag and not struc_flag, "only the LM-loss branch is kernelized"
    # TODO(synk): sc_flag / struc_flag branches need autoregressive sampling +
    # external CIDEr/self-critical reward; no clean Pallas equivalent.
    # TODO(synk): ipm_alpha / gumbel_alpha counterfactual branches need an
    # external classifier + Gumbel sampling; skipped (opt.*_alpha == 0).

    input_seq = labels[..., :-1]                     # (B, T)
    out_seq = labels[..., 1:]                        # (B, T)
    out_mask = masks[..., 1:].astype(jnp.float32)    # (B, T)

    ids3 = input_seq[:, :, None].astype(jnp.int32)            # (B, T, 1)
    tgt3 = out_seq[:, :, None].astype(jnp.int32)              # (B, T, 1)
    mask3 = out_mask[:, :, None]                              # (B, T, 1)
    fc3 = fc_feats[:, None, :]                                # (B, 1, Dfc)
    attm3 = att_masks[:, :, None].astype(jnp.float32)         # (B, Natt, 1)

    lm_loss = _lm_loss_pallas(ids3, fc3, att_feats, attm3, tgt3, mask3,
                              params["E"], params["W_fc"], params["W_att"],
                              params["W_out"])

    out = {}
    loss = lm_loss                       # elif not sc_flag: loss += lm_loss
    out["lm_loss"] = lm_loss
    out["loss"] = loss
    return out


# --------------------------------------------------------------------------
# Pure-JAX reference of the same forward (for correctness check)
# --------------------------------------------------------------------------
def _reference(params, fc_feats, att_feats, labels, masks, att_masks):
    input_seq = labels[..., :-1]
    out_seq = labels[..., 1:]
    out_mask = masks[..., 1:].astype(jnp.float32)
    att_pool = ((att_feats * att_masks[..., None]).sum(1)
                / (att_masks.sum(1, keepdims=True) + 1e-8))
    ctx = fc_feats @ params["W_fc"] + att_pool @ params["W_att"]
    emb = jnp.take(params["E"], input_seq, axis=0)
    h = jnp.tanh(emb + ctx[:, None, :])
    logits = h @ params["W_out"]
    logp = jax.nn.log_softmax(logits, axis=-1)
    tgt_lp = jnp.take_along_axis(logp, out_seq[..., None], axis=-1)[..., 0]
    return -(tgt_lp * out_mask).sum() / out_mask.sum()


# --------------------------------------------------------------------------
if __name__ == "__main__":
    # --- sizes (small, consistent with a captioning forward) --------------
    B, L, V, H = 2, 9, 128, 32          # labels (B, L) -> T = L - 1 = 8
    Natt, Datt, Dfc = 16, 32, 32
    T = L - 1

    # --- deterministic params & inputs -------------------------------------
    key = jax.random.PRNGKey(0)
    k = jax.random.split(key, 8)
    params = {
        "E":     (0.1 * jax.random.normal(k[0], (V, H))).astype(jnp.float32),
        "W_fc":  (0.1 * jax.random.normal(k[1], (Dfc, H))).astype(jnp.float32),
        "W_att": (0.1 * jax.random.normal(k[2], (Datt, H))).astype(jnp.float32),
        "W_out": (0.1 * jax.random.normal(k[3], (H, V))).astype(jnp.float32),
    }

    class Opt:  # minimal stand-in for the training config
        use_hal = False
        ipm_alpha = 0.0
        gumbel_alpha = 0.0
        label_smoothing = 0.0
        structure_loss_weight = 0.0
    opt = Opt()

    fc_feats = jax.random.normal(k[4], (B, Dfc), dtype=jnp.float32)
    att_feats = jax.random.normal(k[5], (B, Natt, Datt), dtype=jnp.float32)
    labels = jax.random.randint(k[6], (B, L), 0, V, dtype=jnp.int32)
    lengths = jnp.array([L, 6], dtype=jnp.int32)
    masks = (jnp.arange(L)[None, :] < lengths[:, None]).astype(jnp.float32)
    att_masks = jnp.ones((B, Natt), dtype=jnp.float32)

    out = loss_wrapper_forward(params, opt, fc_feats, att_feats, labels,
                               masks, att_masks, sc_flag=False,
                               struc_flag=False)
    loss = jax.block_until_ready(out["loss"])

    ref = _reference(params, fc_feats, att_feats, labels, masks, att_masks)
    assert jnp.allclose(loss, ref, atol=1e-4, rtol=1e-4), (loss, ref)

    print("KERNEL_OK")
</pallas_src>

<mosaic_0001>
module attributes {stable_mosaic.version = 11 : i64} {
  func.func @_lm_loss_kernel(%arg0: i32, %arg1: memref<2x8x1xi32, #tpu.memory_space<vmem>>, %arg2: memref<2x1x32xf32, #tpu.memory_space<vmem>>, %arg3: memref<2x16x32xf32, #tpu.memory_space<vmem>>, %arg4: memref<2x16x1xf32, #tpu.memory_space<vmem>>, %arg5: memref<2x8x1xi32, #tpu.memory_space<vmem>>, %arg6: memref<2x8x1xf32, #tpu.memory_space<vmem>>, %arg7: memref<128x32xf32, #tpu.memory_space<vmem>>, %arg8: memref<32x32xf32, #tpu.memory_space<vmem>>, %arg9: memref<32x32xf32, #tpu.memory_space<vmem>>, %arg10: memref<32x128xf32, #tpu.memory_space<vmem>>, %arg11: memref<1x1xf32, #tpu.memory_space<vmem>>, %arg12: memref<1x1xf32, #tpu.memory_space<vmem>>) attributes {dimension_semantics = [#tpu.dimension_semantics<parallel>], iteration_bounds = array<i64: 1>, scalar_prefetch = 0 : i64, scratch_operands = 0 : i64, tpu.core_type = #tpu.core_type<tc>, window_params = [{transform_indices = @transform_0, window_bounds = array<i64: 2, 8, 1>}, {transform_indices = @transform_1, window_bounds = array<i64: 2, 1, 32>}, {transform_indices = @transform_2, window_bounds = array<i64: 2, 16, 32>}, {transform_indices = @transform_3, window_bounds = array<i64: 2, 16, 1>}, {transform_indices = @transform_4, window_bounds = array<i64: 2, 8, 1>}, {transform_indices = @transform_5, window_bounds = array<i64: 2, 8, 1>}, {pipeline_mode = #tpu.pipeline_mode<synchronous>, transform_indices = @transform_6, window_bounds = array<i64: 128, 32>}, {pipeline_mode = #tpu.pipeline_mode<synchronous>, transform_indices = @transform_7, window_bounds = array<i64: 32, 32>}, {pipeline_mode = #tpu.pipeline_mode<synchronous>, transform_indices = @transform_8, window_bounds = array<i64: 32, 32>}, {pipeline_mode = #tpu.pipeline_mode<synchronous>, transform_indices = @transform_9, window_bounds = array<i64: 32, 128>}, {transform_indices = @transform_10, window_bounds = array<i64: 1, 1>}, {transform_indices = @transform_11, window_bounds = array<i64: 1, 1>}]} {
    %c0 = arith.constant 0 : index
    %c0_0 = arith.constant 0 : index
    %c0_1 = arith.constant 0 : index
    %0 = vector.load %arg1[%c0, %c0_0, %c0_1] : memref<2x8x1xi32, #tpu.memory_space<vmem>>, vector<2x8x1xi32>
    %1 = vector.shape_cast %0 : vector<2x8x1xi32> to vector<16x1xi32>
    %2 = tpu.iota {dimensions = array<i32: 1>} : vector<16x128xi32>
    %3 = vector.broadcast %1 : vector<16x1xi32> to vector<16x128xi32>
    %4 = arith.cmpi eq, %2, %3 : vector<16x128xi32>
    %5 = arith.extui %4 : vector<16x128xi1> to vector<16x128xi32>
    %6 = arith.sitofp %5 : vector<16x128xi32> to vector<16x128xf32>
    %c0_2 = arith.constant 0 : index
    %c0_3 = arith.constant 0 : index
    %7 = vector.load %arg7[%c0_2, %c0_3] : memref<128x32xf32, #tpu.memory_space<vmem>>, vector<128x32xf32>
    %cst = arith.constant dense<0.000000e+00> : vector<16x32xf32>
    %8 = tpu.matmul %6, %7, %cst {dimension_numbers = #tpu.dot_dimension_numbers<[1], [0], [0], [1], [0, 0, 1, 1], [], []>} : vector<16x128xf32>, vector<128x32xf32>, vector<16x32xf32> -> vector<16x32xf32>
    %c0_4 = arith.constant 0 : index
    %c0_5 = arith.constant 0 : index
    %c0_6 = arith.constant 0 : index
    %9 = vector.load %arg3[%c0_4, %c0_5, %c0_6] : memref<2x16x32xf32, #tpu.memory_space<vmem>>, vector<2x16x32xf32>
    %c0_7 = arith.constant 0 : index
    %c0_8 = arith.constant 0 : index
    %c0_9 = arith.constant 0 : index
    %10 = vector.load %arg4[%c0_7, %c0_8, %c0_9] : memref<2x16x1xf32, #tpu.memory_space<vmem>>, vector<2x16x1xf32>
    %11 = vector.broadcast %10 : vector<2x16x1xf32> to vector<2x16x32xf32>
    %12 = arith.mulf %9, %11 : vector<2x16x32xf32>
    %cst_10 = arith.constant dense<0.000000e+00> : vector<2x32xf32>
    %13 = vector.multi_reduction <add>, %12, %cst_10 [1] : vector<2x16x32xf32> to vector<2x32xf32>
    %cst_11 = arith.constant dense<0.000000e+00> : vector<2x1xf32>
    %14 = vector.multi_reduction <add>, %10, %cst_11 [1] : vector<2x16x1xf32> to vector<2x1xf32>
    %cst_12 = arith.constant 9.99999993E-9 : f32
    %15 = vector.broadcast %cst_12 : f32 to vector<2x1xf32>
    %16 = arith.addf %14, %15 : vector<2x1xf32>
    %17 = vector.broadcast %16 : vector<2x1xf32> to vector<2x32xf32>
    %18 = arith.divf %13, %17 : vector<2x32xf32>
    %c0_13 = arith.constant 0 : index
    %c0_14 = arith.constant 0 : index
    %c0_15 = arith.constant 0 : index
    %19 = vector.load %arg2[%c0_13, %c0_14, %c0_15] : memref<2x1x32xf32, #tpu.memory_space<vmem>>, vector<2x1x32xf32>
    %20 = vector.shape_cast %19 : vector<2x1x32xf32> to vector<2x32xf32>
    %c0_16 = arith.constant 0 : index
    %c0_17 = arith.constant 0 : index
    %21 = vector.load %arg8[%c0_16, %c0_17] : memref<32x32xf32, #tpu.memory_space<vmem>>, vector<32x32xf32>
    %cst_18 = arith.constant dense<0.000000e+00> : vector<2x32xf32>
    %22 = tpu.matmul %20, %21, %cst_18 {dimension_numbers = #tpu.dot_dimension_numbers<[1], [0], [0], [1], [0, 0, 1, 1], [], []>} : vector<2x32xf32>, vector<32x32xf32>, vector<2x32xf32> -> vector<2x32xf32>
    %c0_19 = arith.constant 0 : index
    %c0_20 = arith.constant 0 : index
    %23 = vector.load %arg9[%c0_19, %c0_20] : memref<32x32xf32, #tpu.memory_space<vmem>>, vector<32x32xf32>
    %cst_21 = arith.constant dense<0.000000e+00> : vector<2x32xf32>
    %24 = tpu.matmul %18, %23, %cst_21 {dimension_numbers = #tpu.dot_dimension_numbers<[1], [0], [0], [1], [0, 0, 1, 1], [], []>} : vector<2x32xf32>, vector<32x32xf32>, vector<2x32xf32> -> vector<2x32xf32>
    %25 = arith.addf %22, %24 : vector<2x32xf32>
    %26 = vector.shape_cast %25 : vector<2x32xf32> to vector<2x1x32xf32>
    %27 = vector.shape_cast %26 : vector<2x1x32xf32> to vector<2x1x32xf32>
    %28 = vector.broadcast %27 : vector<2x1x32xf32> to vector<2x8x32xf32>
    %29 = vector.shape_cast %28 : vector<2x8x32xf32> to vector<16x32xf32>
    %30 = arith.addf %8, %29 : vector<16x32xf32>
    %31 = math.tanh %30 : vector<16x32xf32>
    %c0_22 = arith.constant 0 : index
    %c0_23 = arith.constant 0 : index
    %32 = vector.load %arg10[%c0_22, %c0_23] : memref<32x128xf32, #tpu.memory_space<vmem>>, vector<32x128xf32>
    %cst_24 = arith.constant dense<0.000000e+00> : vector<16x128xf32>
    %33 = tpu.matmul %31, %32, %cst_24 {dimension_numbers = #tpu.dot_dimension_numbers<[1], [0], [0], [1], [0, 0, 1, 1], [], []>} : vector<16x32xf32>, vector<32x128xf32>, vector<16x128xf32> -> vector<16x128xf32>
    %cst_25 = arith.constant dense<0xFF800000> : vector<16xf32>
    %34 = vector.multi_reduction <maximumf>, %33, %cst_25 [1] : vector<16x128xf32> to vector<16xf32>
    %35 = vector.shape_cast %34 : vector<16xf32> to vector<16x1xf32>
    %36 = vector.broadcast %35 : vector<16x1xf32> to vector<16x128xf32>
    %37 = arith.subf %33, %36 : vector<16x128xf32>
    %38 = math.exp %37 : vector<16x128xf32>
    %cst_26 = arith.constant dense<0.000000e+00> : vector<16xf32>
    %39 = vector.multi_reduction <add>, %38, %cst_26 [1] : vector<16x128xf32> to vector<16xf32>
    %40 = vector.shape_cast %39 : vector<16xf32> to vector<16x1xf32>
    %41 = math.log %40 : vector<16x1xf32>
    %42 = arith.addf %35, %41 : vector<16x1xf32>
    %c0_27 = arith.constant 0 : index
    %c0_28 = arith.constant 0 : index
    %c0_29 = arith.constant 0 : index
    %43 = vector.load %arg5[%c0_27, %c0_28, %c0_29] : memref<2x8x1xi32, #tpu.memory_space<vmem>>, vector<2x8x1xi32>
    %44 = vector.shape_cast %43 : vector<2x8x1xi32> to vector<16x1xi32>
    %45 = vector.broadcast %44 : vector<16x1xi32> to vector<16x128xi32>
    %46 = arith.cmpi eq, %2, %45 : vector<16x128xi32>
    %cst_30 = arith.constant 0.000000e+00 : f32
    %47 = vector.broadcast %cst_30 : f32 to vector<16x128xf32>
    %48 = arith.select %46, %33, %47 : vector<16x128xi1>, vector<16x128xf32>
    %cst_31 = arith.constant dense<0.000000e+00> : vector<16xf32>
    %49 = vector.multi_reduction <add>, %48, %cst_31 [1] : vector<16x128xf32> to vector<16xf32>
    %50 = vector.shape_cast %49 : vector<16xf32> to vector<16x1xf32>
    %51 = arith.subf %50, %42 : vector<16x1xf32>
    %c0_32 = arith.constant 0 : index
    %c0_33 = arith.constant 0 : index
    %c0_34 = arith.constant 0 : index
    %52 = vector.load %arg6[%c0_32, %c0_33, %c0_34] : memref<2x8x1xf32, #tpu.memory_space<vmem>>, vector<2x8x1xf32>
    %53 = vector.shape_cast %52 : vector<2x8x1xf32> to vector<16x1xf32>
    %54 = arith.mulf %51, %53 : vector<16x1xf32>
    %55 = vector.shape_cast %54 : vector<16x1xf32> to vector<1x16x1xf32>
    %cst_35 = arith.constant dense<0.000000e+00> : vector<1xf32>
    %56 = vector.multi_reduction <add>, %55, %cst_35 [1, 2] : vector<1x16x1xf32> to vector<1xf32>
    %57 = vector.shape_cast %56 : vector<1xf32> to vector<1x1x1xf32>
    %58 = vector.extract %57[0, 0, 0] : f32 from vector<1x1x1xf32>
    %59 = vector.broadcast %58 : f32 to vector<1x1xf32>
    %cst_36 = arith.constant 0.000000e+00 : f32
    %60 = vector.broadcast %cst_36 : f32 to vector<1x1xf32>
    %61 = arith.subf %60, %59 : vector<1x1xf32>
    %c0_37 = arith.constant 0 : index
    %c0_38 = arith.constant 0 : index
    %62 = vector.load %arg11[%c0_37, %c0_38] : memref<1x1xf32, #tpu.memory_space<vmem>>, vector<1x1xf32>
    tpu.vector_store %arg11[%c0_37, %c0_38], %61 {strides = array<i32>} : memref<1x1xf32, #tpu.memory_space<vmem>>, vector<1x1xf32>,
    %63 = vector.shape_cast %53 : vector<16x1xf32> to vector<1x16x1xf32>
    %cst_39 = arith.constant dense<0.000000e+00> : vector<1xf32>
    %64 = vector.multi_reduction <add>, %63, %cst_39 [1, 2] : vector<1x16x1xf32> to vector<1xf32>
    %65 = vector.shape_cast %64 : vector<1xf32> to vector<1x1x1xf32>
    %66 = vector.extract %65[0, 0, 0] : f32 from vector<1x1x1xf32>
    %67 = vector.broadcast %66 : f32 to vector<1x1xf32>
    %c0_40 = arith.constant 0 : index
    %c0_41 = arith.constant 0 : index
    %68 = vector.load %arg12[%c0_40, %c0_41] : memref<1x1xf32, #tpu.memory_space<vmem>>, vector<1x1xf32>
    tpu.vector_store %arg12[%c0_40, %c0_41], %67 {strides = array<i32>} : memref<1x1xf32, #tpu.memory_space<vmem>>, vector<1x1xf32>,
    return
  }
  func.func @transform_0(%arg0: i32) -> (i32, i32, i32) {
    %c0_i32 = arith.constant 0 : i32
    %c0_i32_0 = arith.constant 0 : i32
    %c0_i32_1 = arith.constant 0 : i32
    return %arg0, %c0_i32, %c0_i32_0 : i32, i32, i32
  }
  func.func @transform_1(%arg0: i32) -> (i32, i32, i32) {
    %c0_i32 = arith.constant 0 : i32
    %c0_i32_0 = arith.constant 0 : i32
    %c0_i32_1 = arith.constant 0 : i32
    return %arg0, %c0_i32, %c0_i32_0 : i32, i32, i32
  }
  func.func @transform_2(%arg0: i32) -> (i32, i32, i32) {
    %c0_i32 = arith.constant 0 : i32
    %c0_i32_0 = arith.constant 0 : i32
    %c0_i32_1 = arith.constant 0 : i32
    return %arg0, %c0_i32, %c0_i32_0 : i32, i32, i32
  }
  func.func @transform_3(%arg0: i32) -> (i32, i32, i32) {
    %c0_i32 = arith.constant 0 : i32
    %c0_i32_0 = arith.constant 0 : i32
    %c0_i32_1 = arith.constant 0 : i32
    return %arg0, %c0_i32, %c0_i32_0 : i32, i32, i32
  }
  func.func @transform_4(%arg0: i32) -> (i32, i32, i32) {
    %c0_i32 = arith.constant 0 : i32
    %c0_i32_0 = arith.constant 0 : i32
    %c0_i32_1 = arith.constant 0 : i32
    return %arg0, %c0_i32, %c0_i32_0 : i32, i32, i32
  }
  func.func @transform_5(%arg0: i32) -> (i32, i32, i32) {
    %c0_i32 = arith.constant 0 : i32
    %c0_i32_0 = arith.constant 0 : i32
    %c0_i32_1 = arith.constant 0 : i32
    return %arg0, %c0_i32, %c0_i32_0 : i32, i32, i32
  }
  func.func @transform_6(%arg0: i32) -> (i32, i32) {
    %c0_i32 = arith.constant 0 : i32
    %c0_i32_0 = arith.constant 0 : i32
    %c0_i32_1 = arith.constant 0 : i32
    return %c0_i32, %c0_i32_0 : i32, i32
  }
  func.func @transform_7(%arg0: i32) -> (i32, i32) {
    %c0_i32 = arith.constant 0 : i32
    %c0_i32_0 = arith.constant 0 : i32
    %c0_i32_1 = arith.constant 0 : i32
    return %c0_i32, %c0_i32_0 : i32, i32
  }
  func.func @transform_8(%arg0: i32) -> (i32, i32) {
    %c0_i32 = arith.constant 0 : i32
    %c0_i32_0 = arith.constant 0 : i32
    %c0_i32_1 = arith.constant 0 : i32
    return %c0_i32, %c0_i32_0 : i32, i32
  }
  func.func @transform_9(%arg0: i32) -> (i32, i32) {
    %c0_i32 = arith.constant 0 : i32
    %c0_i32_0 = arith.constant 0 : i32
    %c0_i32_1 = arith.constant 0 : i32
    return %c0_i32, %c0_i32_0 : i32, i32
  }
  func.func @transform_10(%arg0: i32) -> (i32, i32) {
    %c0_i32 = arith.constant 0 : i32
    %c0_i32_0 = arith.constant 0 : i32
    return %arg0, %c0_i32 : i32, i32
  }
  func.func @transform_11(%arg0: i32) -> (i32, i32) {
    %c0_i32 = arith.constant 0 : i32
    %c0_i32_0 = arith.constant 0 : i32
    return %arg0, %c0_i32 : i32, i32
  }
}

</mosaic_0001>

<llo_original>
// kernel: tpu_custom_call.1
$region0: #{tpu_custom_call.1}
  #allocation0 [shape = 'u32[]', space=smem, size = 0x4, offset = 0x4, fixed_abs, tag = 'smem constant byte address 0x4 - core index']
  #allocation1 [shape = 'u32[72,128]{1,0:T(1,128)}', space=vmem, size = 0x9000, scoped, tag = 'internal scratch']
  %s0 = inlined_call_operand.vmem [shape: s32[2,8,1], index: 0, kind: input, shape index: {}]
  %s1 = inlined_call_operand.vmem [shape: f32[2,1,32], index: 1, kind: input, shape index: {}]
  %s2 = inlined_call_operand.vmem [shape: f32[2,16,32], index: 2, kind: input, shape index: {}]
  %s3 = inlined_call_operand.vmem [shape: f32[2,16,1], index: 3, kind: input, shape index: {}]
  %s4 = inlined_call_operand.vmem [shape: s32[2,8,1], index: 4, kind: input, shape index: {}]
  %s5 = inlined_call_operand.vmem [shape: f32[2,8,1], index: 5, kind: input, shape index: {}]
  %s6 = inlined_call_operand.vmem [shape: f32[128,32], index: 6, kind: input, shape index: {}]
  %s7 = inlined_call_operand.vmem [shape: f32[32,32], index: 7, kind: input, shape index: {}]
  %s8 = inlined_call_operand.vmem [shape: f32[32,32], index: 8, kind: input, shape index: {}]
  %s9 = inlined_call_operand.vmem [shape: f32[32,128], index: 9, kind: input, shape index: {}]
  %s10 = inlined_call_operand.hbm [shape: f32[1,1], index: 10, kind: output, shape index: {0}]
  %s11 = inlined_call_operand.hbm [shape: f32[1,1], index: 11, kind: output, shape index: {1}]
  %12 = xla_tuple %s10, %s11
  %s13 = sld [smem:[#allocation0]]
  $region58: #{tpu_custom_call.1} parent=0
    _
  %s15 = ssub.s32 1, %s13
  %s16 = scalar_select 0, %s15, %s13
  $region1: #{tpu_custom_call.1} parent=0
    #allocation2 [shape = 'u8[512]{0}', space=vmem, size = 0x400, scoped, tag = 'output window, operand 0, single buffered']
    #allocation3 [shape = 's32[1]{0}', space=sflag, size = 0x4, scoped, tag = 'scoped memory for tpu_custom_call.1']
    #allocation4 [shape = 'u8[512]{0}', space=vmem, size = 0x400, scoped, tag = 'output window, operand 1, single buffered']
    #allocation5 [shape = 's32[1]{0}', space=sflag, size = 0x4, scoped, tag = 'scoped memory for tpu_custom_call.1']
    %17 = vsyncpa [#allocation3], 0
    %18 = vsyncpa [#allocation5], 0
    // Predicated region
    $region2: #{tpu_custom_call.1} parent=1 // pred_check
      _
    $region3: #{tpu_custom_call.1} parent=1 // pred_check_branch
      %20 = sbr.rel (0) target = $region5
    $region4: #{tpu_custom_call.1} parent=1 // pred_region
      _
    $region5: #{tpu_custom_call.1} parent=1 // pred_fallthru
      _
    // Predicated region
    $region6: #{tpu_custom_call.1} parent=1 // pred_check
      _
    $region7: #{tpu_custom_call.1} parent=1 // pred_check_branch
      %22 = sbr.rel (0) target = $region9
    $region8: #{tpu_custom_call.1} parent=1 // pred_region
      _
    $region9: #{tpu_custom_call.1} parent=1 // pred_fallthru
      _
    // Predicated region
    $region10: #{tpu_custom_call.1} parent=1 // pred_check
      _
    $region11: #{tpu_custom_call.1} parent=1 // pred_check_branch
      %24 = sbr.rel (0) target = $region13
    $region12: #{tpu_custom_call.1} parent=1 // pred_region
      _
    $region13: #{tpu_custom_call.1} parent=1 // pred_fallthru
      _
    // Predicated region
    $region14: #{tpu_custom_call.1} parent=1 // pred_check
      _
    $region15: #{tpu_custom_call.1} parent=1 // pred_check_branch
      %26 = sbr.rel (0) target = $region17
    $region16: #{tpu_custom_call.1} parent=1 // pred_region
      _
    $region17: #{tpu_custom_call.1} parent=1 // pred_fallthru
      _
    // Predicated region
    $region18: #{tpu_custom_call.1} parent=1 // pred_check
      _
    $region19: #{tpu_custom_call.1} parent=1 // pred_check_branch
      %28 = sbr.rel (0) target = $region21
    $region20: #{tpu_custom_call.1} parent=1 // pred_region
      _
    $region21: #{tpu_custom_call.1} parent=1 // pred_fallthru
      _
    // Predicated region
    $region22: #{tpu_custom_call.1} parent=1 // pred_check
      _
    $region23: #{tpu_custom_call.1} parent=1 // pred_check_branch
      %30 = sbr.rel (0) target = $region25
    $region24: #{tpu_custom_call.1} parent=1 // pred_region
      _
    $region25: #{tpu_custom_call.1} parent=1 // pred_fallthru
      _
    // Predicated region
    $region26: #{tpu_custom_call.1} parent=1 // pred_check
      _
    $region27: #{tpu_custom_call.1} parent=1 // pred_check_branch
      %32 = sbr.rel (0) target = $region29
    $region28: #{tpu_custom_call.1} parent=1 // pred_region
      _
    $region29: #{tpu_custom_call.1} parent=1 // pred_fallthru
      _
    // Predicated region
    $region30: #{tpu_custom_call.1} parent=1 // pred_check
      _
    $region31: #{tpu_custom_call.1} parent=1 // pred_check_branch
      %34 = sbr.rel (0) target = $region33
    $region32: #{tpu_custom_call.1} parent=1 // pred_region
      _
    $region33: #{tpu_custom_call.1} parent=1 // pred_fallthru
      _
    // Predicated region
    $region34: #{tpu_custom_call.1} parent=1 // pred_check
      _
    $region35: #{tpu_custom_call.1} parent=1 // pred_check_branch
      %36 = sbr.rel (0) target = $region37
    $region36: #{tpu_custom_call.1} parent=1 // pred_region
      _
    $region37: #{tpu_custom_call.1} parent=1 // pred_fallthru
      _
    // Predicated region
    $region38: #{tpu_custom_call.1} parent=1 // pred_check
      _
    $region39: #{tpu_custom_call.1} parent=1 // pred_check_branch
      %38 = sbr.rel (0) target = $region41
    $region40: #{tpu_custom_call.1} parent=1 // pred_region
      _
    $region41: #{tpu_custom_call.1} parent=1 // pred_fallthru
      _
    %v39 = vld [vmem:[%s0] sm:$0xff]
    %v40 = vld [vmem:[%s0 + $0x8] sm:$0xff]
    %v41 = vlaneseq
    %v42 = vand.u32 %v41, 127
    %43 = vset.pattern.permute.xlu0 0
    %44 = vperm.xlu0 %43, %v39
    %v45 = vpop.permute.xlu0 %44
    %46 = vset.pattern.permute.xlu0 0
    %47 = vperm.xlu0 %46, %v40
    %v48 = vpop.permute.xlu0 %47
    %vm49 = vcmp.eq.s32.totalorder %v42, %v45
    %vm50 = vcmp.eq.s32.totalorder %v42, %v48
    %v51 = vsel %vm49, 1, 0
    %v52 = vsel %vm50, 1, 0
    %v53 = vcvt.s32.f32 %v51
    %v54 = vcvt.s32.f32 %v52
    %v55 = vld [vmem:[%s6] sm:$0xff]
    %v56 = vld [vmem:[%s6 + $0x8] sm:$0xff]
    %v57 = vld [vmem:[%s6 + $0x10] sm:$0xff]
    %v58 = vld [vmem:[%s6 + $0x18] sm:$0xff]
    %v59 = vld [vmem:[%s6 + $0x20] sm:$0xff]
    %v60 = vld [vmem:[%s6 + $0x28] sm:$0xff]
    %v61 = vld [vmem:[%s6 + $0x30] sm:$0xff]
    %v62 = vld [vmem:[%s6 + $0x38] sm:$0xff]
    %v63 = vld [vmem:[%s6 + $0x40] sm:$0xff]
    %v64 = vld [vmem:[%s6 + $0x48] sm:$0xff]
    %v65 = vld [vmem:[%s6 + $0x50] sm:$0xff]
    %v66 = vld [vmem:[%s6 + $0x58] sm:$0xff]
    %v67 = vld [vmem:[%s6 + $0x60] sm:$0xff]
    %v68 = vld [vmem:[%s6 + $0x68] sm:$0xff]
    %v69 = vld [vmem:[%s6 + $0x70] sm:$0xff]
    %v70 = vld [vmem:[%s6 + $0x78] sm:$0xff]
    %v71 = vld [vmem:[%s2] sm:$0xff]
    %v72 = vld [vmem:[%s2 + $0x8] sm:$0xff]
    %v73 = vld [vmem:[%s2 + $0x10] sm:$0xff]
    %v74 = vld [vmem:[%s2 + $0x18] sm:$0xff]
    %v75 = vld [vmem:[%s3] sm:$0xff]
    %v76 = vld [vmem:[%s3 + $0x8] sm:$0xff]
    %v77 = vld [vmem:[%s3 + $0x10] sm:$0xff]
    %v78 = vld [vmem:[%s3 + $0x18] sm:$0xff]
    %80 = vset.pattern.permute.xlu0 0
    %81 = vperm.xlu0 %80, %v75
    %v82 = vpop.permute.xlu0 %81
    %85 = vset.pattern.permute.xlu0 0
    %86 = vperm.xlu0 %85, %v76
    %v87 = vpop.permute.xlu0 %86
    %90 = vset.pattern.permute.xlu0 0
    %91 = vperm.xlu0 %90, %v77
    %v92 = vpop.permute.xlu0 %91
    %95 = vset.pattern.permute.xlu0 0
    %96 = vperm.xlu0 %95, %v78
    %v97 = vpop.permute.xlu0 %96
    %v99 = vmul.f32 %v71, %v82
    %v100 = vmul.f32 %v72, %v87
    %v101 = vmul.f32 %v73, %v92
    %v102 = vmul.f32 %v74, %v97
    %vm103 = vcmask 261120
    %v104 = vsel %vm103, %v99, 0.0
    %v105 = vsel %vm103, %v100, 0.0
    %v106 = vadd.f32 %v104, %v105
    %v107 = vrot.slane %v106, 4
    %v108 = vadd.f32 %v106, %v107
    %v109 = vrot.slane %v108, 2
    %v110 = vadd.f32 %v108, %v109
    %v111 = vrot.slane %v110, 1
    %v112 = vadd.f32 %v110, %v111
    %v113 = vsel %vm103, %v101, 0.0
    %v114 = vsel %vm103, %v102, 0.0
    %v115 = vadd.f32 %v113, %v114
    %v116 = vrot.slane %v115, 4
    %v117 = vadd.f32 %v115, %v116
    %v118 = vrot.slane %v117, 2
    %v119 = vadd.f32 %v117, %v118
    %v120 = vrot.slane %v119, 1
    %v121 = vadd.f32 %v119, %v120
    %vm122 = vcmask 7168
    %v123 = vsel %vm122, %v75, 0.0
    %v124 = vsel %vm122, %v76, 0.0
    %v125 = vadd.f32 %v123, %v124
    %v126 = vrot.slane %v125, 4
    %v127 = vadd.f32 %v125, %v126
    %v128 = vrot.slane %v127, 2
    %v129 = vadd.f32 %v127, %v128
    %v130 = vrot.slane %v129, 1
    %v131 = vadd.f32 %v129, %v130
    %v132 = vsel %vm122, %v77, 0.0
    %v133 = vsel %vm122, %v78, 0.0
    %v134 = vadd.f32 %v132, %v133
    %v135 = vrot.slane %v134, 4
    %v136 = vadd.f32 %v134, %v135
    %v137 = vrot.slane %v136, 2
    %v138 = vadd.f32 %v136, %v137
    %v139 = vrot.slane %v138, 1
    %v140 = vadd.f32 %v138, %v139
    %v141 = vadd.f32 %v131, 1e-08
    %v142 = vadd.f32 %v140, 1e-08
    %144 = vset.pattern.permute.xlu0 0
    %145 = vperm.xlu0 %144, %v141
    %v146 = vpop.permute.xlu0 %145
    %149 = vset.pattern.permute.xlu0 0
    %150 = vperm.xlu0 %149, %v142
    %v151 = vpop.permute.xlu0 %150
    %v153 = vrcp.pop %v146
    %v154 = vmul.f32 %v146, %v153
    %v155 = vsub.f32 1.0, %v154
    %v156 = vmul.f32 %v153, %v155
    %v157 = vadd.f32 %v153, %v156
    %vm158 = vweird.f32 %v146
    %vm159 = vweird.f32 %v153
    %vm160 = vmor %vm158, %vm159
    %v161 = vsel %vm160, %v153, %v157
    %v162 = vand.u32 2147483647, %v146
    %vm163 = vcmp.eq.f32.partialorder %v162, 8.507059e+37
    %v164 = vand.u32 %v146, 2147483648
    %v165 = vor.u32 1.1754944e-38, %v164
    %v166 = vsel %vm163, %v165, %v161
    %v167 = vmul.f32 %v112, %v166
    %v168 = vrcp.pop %v151
    %v169 = vmul.f32 %v151, %v168
    %v170 = vsub.f32 1.0, %v169
    %v171 = vmul.f32 %v168, %v170
    %v172 = vadd.f32 %v168, %v171
    %vm173 = vweird.f32 %v151
    %vm174 = vweird.f32 %v168
    %vm175 = vmor %vm173, %vm174
    %v176 = vsel %vm175, %v168, %v172
    %v177 = vand.u32 2147483647, %v151
    %vm178 = vcmp.eq.f32.partialorder %v177, 8.507059e+37
    %v179 = vand.u32 %v151, 2147483648
    %v180 = vor.u32 1.1754944e-38, %v179
    %v181 = vsel %vm178, %v180, %v176
    %v182 = vmul.f32 %v121, %v181
    %v183 = vld [vmem:[%s1] sm:$0x1]
    %v184 = vld [vmem:[%s1 + $0x1] sm:$0x1]
    %v185 = vld [vmem:[%s7] sm:$0xff]
    %v186 = vld [vmem:[%s7 + $0x8] sm:$0xff]
    %v187 = vld [vmem:[%s7 + $0x10] sm:$0xff]
    %v188 = vld [vmem:[%s7 + $0x18] sm:$0xff]
    %v189 = vld [vmem:[%s8] sm:$0xff]
    %v190 = vld [vmem:[%s8 + $0x8] sm:$0xff]
    %v191 = vld [vmem:[%s8 + $0x10] sm:$0xff]
    %v192 = vld [vmem:[%s8 + $0x18] sm:$0xff]
    %vm195 = vcmask 1041409
    %v196 = vsel %vm195, %v182, %v167
    %v197 = vsel %vm103, %v196, 0
    %199 = vmatpush.msra.mxu0 0.0
    %200 = vmatpush.msra.mxu0 0.0
    %201 = vmatpush.msra.mxu0 0.0
    %202 = vmatpush.msra.mxu0 0.0
    %203 = vmatpush.msra.mxu0 0.0
    %204 = vmatpush.msra.mxu0 0.0
    %205 = vmatpush.msra.mxu0 0.0
    %206 = vmatpush.msra.mxu0 0.0
    %207 = vmatpush.msra.mxu0 0.0
    %208 = vmatpush.msra.mxu0 0.0
    %209 = vmatpush.msra.mxu0 0.0
    %210 = vmatpush.msra.mxu0 0.0
    %211 = vmatpush.msra.mxu0 %v192
    %212 = vmatpush.msra.mxu0 %v191
    %213 = vmatpush.msra.mxu0 %v190
    %214 = vmatpush.msra.mxu0 %v189
    %215 = vmatmul.f32.gmra.mxu0 %v197
    %v216 = vpop.f32.mrf.mxu0
    %v217 = vadd.f32 0.0, %v216
    %218 = vdwg.mxu0
    %221 = vst [vmem:[#allocation1] ss:$9 sm:$0xff] %v183
    %s222 = scalar_lea.vmem [#allocation1], 1
    %223 = vst [vmem:[%s222] ss:$9 sm:$0xff] %v184
    %v224 = vld [vmem:[#allocation1] sm:$0xff]
    %v225 = vsel %vm103, %v224, 0
    %227 = vmatpush.msra.mxu0 0.0
    %228 = vmatpush.msra.mxu0 0.0
    %229 = vmatpush.msra.mxu0 0.0
    %230 = vmatpush.msra.mxu0 0.0
    %231 = vmatpush.msra.mxu0 0.0
    %232 = vmatpush.msra.mxu0 0.0
    %233 = vmatpush.msra.mxu0 0.0
    %234 = vmatpush.msra.mxu0 0.0
    %235 = vmatpush.msra.mxu0 0.0
    %236 = vmatpush.msra.mxu0 0.0
    %237 = vmatpush.msra.mxu0 0.0
    %238 = vmatpush.msra.mxu0 0.0
    %239 = vmatpush.msra.mxu0 %v188
    %240 = vmatpush.msra.mxu0 %v187
    %241 = vmatpush.msra.mxu0 %v186
    %242 = vmatpush.msra.mxu0 %v185
    %243 = vmatmul.f32.gmra.mxu0 %v225
    %v244 = vpop.f32.mrf.mxu0
    %v245 = vadd.f32 %v217, %v244
    %246 = vdwg.mxu0
    %v248 = vrot.slane %v245, 1
    %v249 = vperm.slane %v245, 0
    %v250 = vperm.slane %v248, 0
    %253 = vmatpush.msra.mxu0 %v70
    %254 = vmatpush.msra.mxu0 %v69
    %255 = vmatpush.msra.mxu0 %v68
    %256 = vmatpush.msra.mxu0 %v67
    %257 = vmatpush.msra.mxu0 %v66
    %258 = vmatpush.msra.mxu0 %v65
    %259 = vmatpush.msra.mxu0 %v64
    %260 = vmatpush.msra.mxu0 %v63
    %261 = vmatpush.msra.mxu0 %v62
    %262 = vmatpush.msra.mxu0 %v61
    %263 = vmatpush.msra.mxu0 %v60
    %264 = vmatpush.msra.mxu0 %v59
    %265 = vmatpush.msra.mxu0 %v58
    %266 = vmatpush.msra.mxu0 %v57
    %267 = vmatpush.msra.mxu0 %v56
    %268 = vmatpush.msra.mxu0 %v55
    %269 = vmatmul.f32.gmra.mxu0 %v53
    %v270 = vpop.f32.mrf.mxu0
    %v271 = vadd.f32 %v249, %v270
    %272 = vmatmul.f32.gmra.mxu0 %v54
    %v273 = vpop.f32.mrf.mxu0
    %v274 = vadd.f32 %v250, %v273
    %275 = vdwg.mxu0
    %v276 = vtanh.pop %v271
    %v277 = vtanh.pop %v274
    %v278 = vld [vmem:[%s9] sm:$0xff]
    %v279 = vld [vmem:[%s9 + $0x8] sm:$0xff]
    %v280 = vld [vmem:[%s9 + $0x10] sm:$0xff]
    %v281 = vld [vmem:[%s9 + $0x18] sm:$0xff]
    %v283 = vsel %vm103, %v276, 0
    %v286 = vsel %vm103, %v277, 0
    %288 = vmatpush.msra.mxu0 0.0
    %289 = vmatpush.msra.mxu0 0.0
    %290 = vmatpush.msra.mxu0 0.0
    %291 = vmatpush.msra.mxu0 0.0
    %292 = vmatpush.msra.mxu0 0.0
    %293 = vmatpush.msra.mxu0 0.0
    %294 = vmatpush.msra.mxu0 0.0
    %295 = vmatpush.msra.mxu0 0.0
    %296 = vmatpush.msra.mxu0 0.0
    %297 = vmatpush.msra.mxu0 0.0
    %298 = vmatpush.msra.mxu0 0.0
    %299 = vmatpush.msra.mxu0 0.0
    %300 = vmatpush.msra.mxu0 %v281
    %301 = vmatpush.msra.mxu0 %v280
    %302 = vmatpush.msra.mxu0 %v279
    %303 = vmatpush.msra.mxu0 %v278
    %304 = vmatmul.f32.gmra.mxu0 %v283
    %v305 = vpop.f32.mrf.mxu0
    %v306 = vadd.f32 0.0, %v305
    %307 = vmatmul.f32.gmra.mxu0 %v286
    %v308 = vpop.f32.mrf.mxu0
    %v309 = vadd.f32 0.0, %v308
    %310 = vdwg.mxu0
    %311 = vmax.xlane.f32.xlu0 %v306
    %v312 = vpop.xlane.xlu0 %311
    %313 = vmax.xlane.f32.xlu0 %v309
    %v314 = vpop.xlane.xlu0 %313
    %v315 = vsub.f32 %v306, %v312
    %v316 = vsub.f32 %v309, %v314
    %v317 = vmul.f32 %v315, 1.442695
    %v318 = vpow.pop %v317
    %v319 = vmul.f32 %v316, 1.442695
    %v320 = vpow.pop %v319
    %321 = vadd.xlane.f32.xlu0 %v318
    %v322 = vpop.xlane.xlu0 %321
    %323 = vadd.xlane.f32.xlu0 %v320
    %v324 = vpop.xlane.xlu0 %323
    %v325 = vlog2.pop %v322
    %v326 = vmul.f32 %v325, 0.6931472
    %v327 = vlog2.pop %v324
    %v328 = vmul.f32 %v327, 0.6931472
    %v329 = vadd.f32 %v312, %v326
    %v330 = vadd.f32 %v314, %v328
    %v331 = vld [vmem:[%s4] sm:$0xff]
    %v332 = vld [vmem:[%s4 + $0x8] sm:$0xff]
    %333 = vset.pattern.permute.xlu0 0
    %334 = vperm.xlu0 %333, %v331
    %v335 = vpop.permute.xlu0 %334
    %336 = vset.pattern.permute.xlu0 0
    %337 = vperm.xlu0 %336, %v332
    %v338 = vpop.permute.xlu0 %337
    %vm339 = vcmp.eq.s32.totalorder %v42, %v335
    %vm340 = vcmp.eq.s32.totalorder %v42, %v338
    %v341 = vsel %vm339, %v306, 0.0
    %v342 = vsel %vm340, %v309, 0.0
    %343 = vadd.xlane.f32.xlu0 %v341
    %v344 = vpop.xlane.xlu0 %343
    %345 = vadd.xlane.f32.xlu0 %v342
    %v346 = vpop.xlane.xlu0 %345
    %v347 = vsub.f32 %v344, %v329
    %v348 = vsub.f32 %v346, %v330
    %v349 = vld [vmem:[%s5] sm:$0xff]
    %v350 = vld [vmem:[%s5 + $0x8] sm:$0xff]
    %v351 = vmul.f32 %v347, %v349
    %v352 = vmul.f32 %v348, %v350
    %v353 = vsel %vm122, %v351, 0.0
    %v354 = vsel %vm122, %v352, 0.0
    %v355 = vadd.f32 %v353, %v354
    %356 = vadd.xlane.f32.xlu0 %v355
    %v357 = vpop.xlane.xlu0 %356
    %v358 = vrot.slane %v357, 4
    %v359 = vadd.f32 %v357, %v358
    %v360 = vrot.slane %v359, 2
    %v361 = vadd.f32 %v359, %v360
    %v362 = vrot.slane %v361, 1
    %v363 = vadd.f32 %v361, %v362
    %s364 = vtos %v363
    %v365 = vstv %s364
    %v366 = vsub.f32 0.0, %v365
    %vm367 = vcmask 0
    %368 = vst.msk [vmem:[#allocation2] sm:$0x1] %vm367, %v366
    %v369 = vsel %vm122, %v349, 0.0
    %v370 = vsel %vm122, %v350, 0.0
    %v371 = vadd.f32 %v369, %v370
    %372 = vadd.xlane.f32.xlu0 %v371
    %v373 = vpop.xlane.xlu0 %372
    %v374 = vrot.slane %v373, 4
    %v375 = vadd.f32 %v373, %v374
    %v376 = vrot.slane %v375, 2
    %v377 = vadd.f32 %v375, %v376
    %v378 = vrot.slane %v377, 1
    %v379 = vadd.f32 %v377, %v378
    %s380 = vtos %v379
    %v381 = vstv %s380
    %382 = vst.msk [vmem:[#allocation4] sm:$0x1] %vm367, %v381
    // Predicated region
    $region42: #{tpu_custom_call.1} parent=1 // pred_check
      _
    $region43: #{tpu_custom_call.1} parent=1 // pred_check_branch
      %384 = sbr.rel (0) target = $region45
    $region44: #{tpu_custom_call.1} parent=1 // pred_region
      %386 = vsyncadd [#allocation3], 0
      %s388 = sshll.u32 [#allocation2], 4
      %s389 = int_to_ptr.vmem [resolvable:$true] %s388
      %s390 = sshll.u32 %s10, 4
      %s391 = int_to_ptr.hbm [resolvable:$true] %s390
      %393 = dma.vmem_to_hbm [thread:$0]  %s389, 16, %s391, [#allocation3]
    $region45: #{tpu_custom_call.1} parent=1 // pred_fallthru
      _
    // Predicated region
    $region46: #{tpu_custom_call.1} parent=1 // pred_check
      _
    $region47: #{tpu_custom_call.1} parent=1 // pred_check_branch
      %395 = sbr.rel (0) target = $region49
    $region48: #{tpu_custom_call.1} parent=1 // pred_region
      %397 = vsyncadd [#allocation5], 0
      %s399 = sshll.u32 [#allocation4], 4
      %s400 = int_to_ptr.vmem [resolvable:$true] %s399
      %s401 = sshll.u32 %s11, 4
      %s402 = int_to_ptr.hbm [resolvable:$true] %s401
      %404 = dma.vmem_to_hbm [thread:$0]  %s400, 16, %s402, [#allocation5]
    $region49: #{tpu_custom_call.1} parent=1 // pred_fallthru
      _
    // Predicated region
    $region50: #{tpu_custom_call.1} parent=1 // pred_check
      _
    $region51: #{tpu_custom_call.1} parent=1 // pred_check_branch
      %406 = sbr.rel (0) target = $region53
    $region52: #{tpu_custom_call.1} parent=1 // pred_region
      %408 = dma.done [#allocation3], 16
    $region53: #{tpu_custom_call.1} parent=1 // pred_fallthru
      _
    // Predicated region
    $region54: #{tpu_custom_call.1} parent=1 // pred_check
      _
    $region55: #{tpu_custom_call.1} parent=1 // pred_check_branch
      %410 = sbr.rel (0) target = $region57
    $region56: #{tpu_custom_call.1} parent=1 // pred_region
      %412 = dma.done [#allocation5], 16
    $region57: #{tpu_custom_call.1} parent=1 // pred_fallthru
      _
    %413 = vsyncpa [#allocation3], 1
    %414 = vsyncpa [#allocation5], 1

</llo_original>
